<compile_context>
chip_gen: v5e
topology: v5e:2x2
jax: 0.10.0
libtpu: 0.0.40
codegen_flags: <defaults>
</compile_context>

<pallas_src>
import functools

import numpy as np
import jax
import jax.numpy as jnp
from jax.experimental import pallas as pl
from jax.experimental.pallas import tpu as pltpu


def _round_up(x, m):
    return ((x + m - 1) // m) * m


def _sat_cnf_kernel(bits_ref, edges_ref, clause_ref):
    """Grid = (n_f, n_e): clause tiles ("parallel") x edge tiles ("arbitrary").

    bits_ref   : (Vp, 2) f32  col 0: (pred > 0.5), col 1: ((1 - pred) > 0.5)
    edges_ref  : (tE, 3) i32  cols: [var idx, clause idx, sign(edge_feature)]
    clause_ref : (1, tF) f32  out: clause values; resident accumulator over E
    """
    k = pl.program_id(1)
    tE = edges_ref.shape[0]
    Vp = bits_ref.shape[0]
    tF = clause_ref.shape[1]

    @pl.when(k == 0)
    def _init():
        clause_ref[...] = jnp.zeros_like(clause_ref)

    vidx = edges_ref[:, 0:1]                                   # (tE, 1) i32
    fidx = edges_ref[:, 1:2]                                   # (tE, 1) i32
    efs = edges_ref[:, 2:3]                                    # (tE, 1) i32 +-1/0

    # Edge truth values via an MXU gather of the per-variable threshold bits.
    # Operands are exactly {0,1}, so any matmul precision is exact here.
    # TODO(synk): for very large V add a V grid axis (or try a lane gather of
    # the resident bits via jnp.take if that lowering proves clean).
    v_iota = jax.lax.broadcasted_iota(jnp.int32, (tE, Vp), 1)
    onehot_v = (v_iota == vidx).astype(jnp.float32)            # (tE, Vp)
    gathered = jnp.dot(onehot_v, bits_ref[...],
                       preferred_element_type=jnp.float32)     # (tE, 2)
    ev = jnp.where(efs > 0, gathered[:, 0:1],
                   jnp.where(efs < 0, gathered[:, 1:2], 0.0))  # (tE, 1) in {0,1}

    # Segment-sum edge truth values into this clause tile on the MXU:
    # (1, tE) ones @ (tE, tF) ev-masked one-hot.  Padded edges have efs == 0
    # -> ev == 0 -> no contribution (padding invariant).
    fidx_local = fidx - pl.program_id(0) * tF
    f_iota = jax.lax.broadcasted_iota(jnp.int32, (tE, tF), 1)
    masked = jnp.where(f_iota == fidx_local, ev, 0.0)          # (tE, tF)
    ones_row = jnp.ones((1, tE), jnp.float32)
    contrib = jnp.dot(ones_row, masked,
                      preferred_element_type=jnp.float32)      # (1, tF)
    clause_ref[...] += contrib

    @pl.when(k == pl.num_programs(1) - 1)
    def _finalize():
        clause_ref[...] = (clause_ref[...] > 0.0).astype(jnp.float32)


@functools.partial(jax.jit, static_argnames=("batch_size", "tile_e", "tile_f"))
def _sat_cnf_forward(variable_prediction, graph_map, batch_function_map,
                     edge_feature, *, batch_size, tile_e, tile_f):
    V = variable_prediction.shape[0]
    E = graph_map.shape[1]
    F = batch_function_map.shape[0]
    B = int(batch_size)

    Vp = _round_up(V, 128)
    tE = min(int(tile_e), _round_up(E, 8))
    Ep = _round_up(E, tE)
    tF = min(int(tile_f), _round_up(F, 128))
    Fp = _round_up(F, tF)
    n_f = Fp // tF
    n_e = Ep // tE

    # Per-variable threshold bits (exact, f32, computed once in the wrapper).
    # edge_value > 0.5  <=>  sign(ef) * (pred[var] - 0.5) > 0.
    pred = variable_prediction.reshape(-1).astype(jnp.float32)
    pos_bit = (pred > 0.5).astype(jnp.float32)           # ef > 0 case
    neg_bit = ((1.0 - pred) > 0.5).astype(jnp.float32)   # ef < 0 case
    bits = jnp.stack([pos_bit, neg_bit], axis=1)                # (V, 2)
    bits = jnp.pad(bits, ((0, Vp - V), (0, 0)))                 # (Vp, 2)

    # Packed edge table: one DMA descriptor per edge tile.
    efs = jnp.sign(edge_feature.reshape(-1).astype(jnp.float32)).astype(jnp.int32)
    edges = jnp.stack([graph_map[0].astype(jnp.int32),
                       graph_map[1].astype(jnp.int32),
                       efs], axis=1)                            # (E, 3)
    edges = jnp.pad(edges, ((0, Ep - E), (0, 0)))               # pad rows: efs=0

    cost = pl.CostEstimate(
        flops=2 * n_f * Ep * 2 * Vp + 2 * Ep * Fp,
        transcendentals=0,
        bytes_accessed=4 * (3 * Ep * n_f + 2 * Vp + Fp),
    )

    # TODO(synk): sweep tile_e / tile_f per TPU generation (larger tE
    # amortizes the ~0.35us/step overhead now that the reduces run on the MXU;
    # co-tune with tF so the (tE, tF) / (tE, Vp) one-hot temporaries stay
    # within the scoped VMEM budget).
    clause_row = pl.pallas_call(
        _sat_cnf_kernel,
        out_shape=jax.ShapeDtypeStruct((1, Fp), jnp.float32),
        grid_spec=pltpu.PrefetchScalarGridSpec(
            num_scalar_prefetch=0,
            grid=(n_f, n_e),
            in_specs=[
                pl.BlockSpec((Vp, 2), lambda f, k: (0, 0)),     # bits (resident)
                pl.BlockSpec((tE, 3), lambda f, k: (k, 0)),     # packed edge tile
            ],
            out_specs=pl.BlockSpec((1, tF), lambda f, k: (0, f)),
        ),
        compiler_params=pltpu.CompilerParams(
            dimension_semantics=("parallel", "arbitrary")),
        cost_estimate=cost,
    )(bits, edges)

    cv = clause_row[0, :F]                                      # (F,)

    # Per-batch reduction + sat/unsat finalize: tiny O(F*B) XLA work, kept out
    # of the kernel so the F grid axis has no cross-tile dependency.
    bfm = batch_function_map.astype(jnp.int32)
    bmask = (bfm[:, None] == jnp.arange(B, dtype=jnp.int32)[None, :])
    bmask = bmask.astype(jnp.float32)                           # (F, B)
    max_sat = jnp.sum(bmask, axis=0)                            # (B,) exact counts
    batch_values = jnp.sum(bmask * cv[:, None], axis=0)         # (B,) exact counts
    sat = (max_sat == batch_values).astype(jnp.float32).reshape(B, 1)
    unsat = (max_sat - batch_values).reshape(B, 1)
    return sat, unsat, cv.reshape(F, 1)


def sat_cnf_evaluator(variable_prediction, graph_map, batch_variable_map,
                      batch_function_map, edge_feature, batch_size,
                      tile_e=512, tile_f=512):
    """Mirrors SatCNFEvaluator.forward(..., vf_mask=None)."""
    # batch_variable_map is only used by the (omitted) vf_mask branch.
    sat_flag, unsat_count, clause_values = _sat_cnf_forward(
        variable_prediction, graph_map, batch_function_map, edge_feature,
        batch_size=int(batch_size), tile_e=int(tile_e), tile_f=int(tile_f))
    res = False
    return res, (sat_flag, unsat_count, graph_map, clause_values), None


def _reference(variable_prediction, graph_map, batch_function_map, edge_feature,
               batch_size):
    vp = np.asarray(variable_prediction)[:, 0]
    ef = np.asarray(edge_feature)[:, 0]
    gm = np.asarray(graph_map)
    bfm = np.asarray(batch_function_map)
    F = bfm.shape[0]
    ev = ef * vp[gm[0]] + (1.0 - ef) / 2.0
    ev = (ev > 0.5).astype(np.float32)
    cv = np.zeros(F, np.float32)
    np.add.at(cv, gm[1], ev)
    cv = (cv > 0).astype(np.float32)
    max_sat = np.zeros(batch_size, np.float32)
    np.add.at(max_sat, bfm, 1.0)
    bv = np.zeros(batch_size, np.float32)
    np.add.at(bv, bfm, cv)
    sat = (max_sat == bv).astype(np.float32)
    return sat.reshape(-1, 1), (max_sat - bv).reshape(-1, 1), cv.reshape(-1, 1)


if __name__ == "__main__":
    key = jax.random.PRNGKey(0)

    # Small synthetic CNF batch: 3 problems, 32 vars / 60 clauses each,
    # 3 literals per clause.
    batch_size = 3
    vars_per_prob = 32
    clauses_per_prob = 60
    lits_per_clause = 3
    V = batch_size * vars_per_prob          # 96
    F = batch_size * clauses_per_prob       # 180
    E = F * lits_per_clause                 # 540

    k1, k2, k3 = jax.random.split(key, 3)

    batch_variable_map = jnp.repeat(jnp.arange(batch_size, dtype=jnp.int32),
                                    vars_per_prob)
    batch_function_map = jnp.repeat(jnp.arange(batch_size, dtype=jnp.int32),
                                    clauses_per_prob)

    # Each clause picks 3 variables from its own problem's variable range.
    clause_batch = np.repeat(np.arange(batch_size, dtype=np.int32),
                             clauses_per_prob)
    local_vars = jax.random.randint(k1, (F, lits_per_clause), 0, vars_per_prob)
    var_idx = (jnp.asarray(clause_batch[:, None]) * vars_per_prob
               + local_vars).reshape(-1).astype(jnp.int32)                # (E,)
    fn_idx = jnp.repeat(jnp.arange(F, dtype=jnp.int32), lits_per_clause)  # (E,)
    graph_map = jnp.stack([var_idx, fn_idx], axis=0)                      # (2, E)

    edge_feature = (jax.random.bernoulli(k2, 0.5, (E, 1)).astype(jnp.float32)
                    * 2.0 - 1.0)                                          # +-1
    variable_prediction = jax.random.uniform(k3, (V, 1), dtype=jnp.float32)

    ref_sat, ref_unsat, ref_cv = _reference(
        variable_prediction, graph_map, batch_function_map, edge_feature,
        batch_size)

    # (128, 128): grid (2, 5) -> exercises both the parallel F axis and the
    # E-accumulator pipeline.  (512, 512): grid (1, 2).
    for tile_e, tile_f in ((128, 128), (512, 512)):
        res, (sat_flag, unsat_count, gm_out, clause_values), extra = \
            sat_cnf_evaluator(variable_prediction, graph_map,
                              batch_variable_map, batch_function_map,
                              edge_feature, batch_size,
                              tile_e=tile_e, tile_f=tile_f)
        jax.block_until_ready((sat_flag, unsat_count, clause_values))

        np.testing.assert_allclose(np.asarray(sat_flag), ref_sat,
                                   atol=0, rtol=0)
        np.testing.assert_allclose(np.asarray(unsat_count), ref_unsat,
                                   atol=0, rtol=0)
        np.testing.assert_allclose(np.asarray(clause_values), ref_cv,
                                   atol=0, rtol=0)

    print("KERNEL_OK")
</pallas_src>

<mosaic_0001>
module attributes {stable_mosaic.version = 11 : i64} {
  func.func @_sat_cnf_kernel(%arg0: i32, %arg1: i32, %arg2: memref<128x2xf32, #tpu.memory_space<vmem>>, %arg3: memref<128x3xi32, #tpu.memory_space<vmem>>, %arg4: memref<1x128xf32, #tpu.memory_space<vmem>>) attributes {dimension_semantics = [#tpu.dimension_semantics<parallel>, #tpu.dimension_semantics<arbitrary>], iteration_bounds = array<i64: 2, 5>, scalar_prefetch = 0 : i64, scratch_operands = 0 : i64, tpu.core_type = #tpu.core_type<tc>, window_params = [{pipeline_mode = #tpu.pipeline_mode<synchronous>, transform_indices = @transform_0, window_bounds = array<i64: 128, 2>}, {transform_indices = @transform_1, window_bounds = array<i64: 128, 3>}, {transform_indices = @transform_2, window_bounds = array<i64: 1, 128>}]} {
    %c0_i32 = arith.constant 0 : i32
    %0 = arith.cmpi eq, %arg1, %c0_i32 : i32
    %1 = arith.extui %0 : i1 to i32
    %c0_i32_0 = arith.constant 0 : i32
    %2 = arith.cmpi ne, %1, %c0_i32_0 : i32
    scf.if %2 {
      %cst_17 = arith.constant 0.000000e+00 : f32
      %40 = vector.broadcast %cst_17 : f32 to vector<1x128xf32>
      %c0_18 = arith.constant 0 : index
      %c0_19 = arith.constant 0 : index
      %41 = vector.load %arg4[%c0_18, %c0_19] : memref<1x128xf32, #tpu.memory_space<vmem>>, vector<1x128xf32>
      tpu.vector_store %arg4[%c0_18, %c0_19], %40 {strides = array<i32>} : memref<1x128xf32, #tpu.memory_space<vmem>>, vector<1x128xf32>,
    } else {
    }
    %c0 = arith.constant 0 : index
    %c0_1 = arith.constant 0 : index
    %3 = vector.load %arg3[%c0, %c0_1] : memref<128x3xi32, #tpu.memory_space<vmem>>, vector<128x1xi32>
    %c0_2 = arith.constant 0 : index
    %c1 = arith.constant 1 : index
    %4 = vector.load %arg3[%c0_2, %c1] : memref<128x3xi32, #tpu.memory_space<vmem>>, vector<128x1xi32>
    %c0_3 = arith.constant 0 : index
    %c2 = arith.constant 2 : index
    %5 = vector.load %arg3[%c0_3, %c2] : memref<128x3xi32, #tpu.memory_space<vmem>>, vector<128x1xi32>
    %6 = tpu.iota {dimensions = array<i32: 1>} : vector<128x128xi32>
    %7 = vector.broadcast %3 : vector<128x1xi32> to vector<128x128xi32>
    %8 = arith.cmpi eq, %6, %7 : vector<128x128xi32>
    %9 = arith.extui %8 : vector<128x128xi1> to vector<128x128xi32>
    %10 = arith.sitofp %9 : vector<128x128xi32> to vector<128x128xf32>
    %c0_4 = arith.constant 0 : index
    %c0_5 = arith.constant 0 : index
    %11 = vector.load %arg2[%c0_4, %c0_5] : memref<128x2xf32, #tpu.memory_space<vmem>>, vector<128x2xf32>
    %cst = arith.constant dense<0.000000e+00> : vector<128x2xf32>
    %12 = tpu.matmul %10, %11, %cst {dimension_numbers = #tpu.dot_dimension_numbers<[1], [0], [0], [1], [0, 0, 1, 1], [], []>} : vector<128x128xf32>, vector<128x2xf32>, vector<128x2xf32> -> vector<128x2xf32>
    %c0_i32_6 = arith.constant 0 : i32
    %13 = vector.broadcast %c0_i32_6 : i32 to vector<128x1xi32>
    %14 = arith.cmpi sgt, %5, %13 : vector<128x1xi32>
    %15 = vector.extract_strided_slice %12 {offsets = [0, 0], sizes = [128, 1], strides = [1, 1]} : vector<128x2xf32> to vector<128x1xf32>
    %c0_i32_7 = arith.constant 0 : i32
    %16 = vector.broadcast %c0_i32_7 : i32 to vector<128x1xi32>
    %17 = arith.cmpi slt, %5, %16 : vector<128x1xi32>
    %18 = vector.extract_strided_slice %12 {offsets = [0, 1], sizes = [128, 1], strides = [1, 1]} : vector<128x2xf32> to vector<128x1xf32>
    %cst_8 = arith.constant 0.000000e+00 : f32
    %19 = vector.broadcast %cst_8 : f32 to vector<128x1xf32>
    %20 = arith.select %17, %18, %19 : vector<128x1xi1>, vector<128x1xf32>
    %21 = arith.select %14, %15, %20 : vector<128x1xi1>, vector<128x1xf32>
    %c128_i32 = arith.constant 128 : i32
    %22 = arith.muli %arg0, %c128_i32 : i32
    %23 = vector.broadcast %22 : i32 to vector<128x1xi32>
    %24 = arith.subi %4, %23 : vector<128x1xi32>
    %25 = tpu.iota {dimensions = array<i32: 1>} : vector<128x128xi32>
    %26 = vector.broadcast %24 : vector<128x1xi32> to vector<128x128xi32>
    %27 = arith.cmpi eq, %25, %26 : vector<128x128xi32>
    %cst_9 = arith.constant 0.000000e+00 : f32
    %28 = vector.shape_cast %21 : vector<128x1xf32> to vector<128x1xf32>
    %29 = vector.broadcast %28 : vector<128x1xf32> to vector<128x128xf32>
    %30 = vector.broadcast %cst_9 : f32 to vector<128x128xf32>
    %31 = arith.select %27, %29, %30 : vector<128x128xi1>, vector<128x128xf32>
    %cst_10 = arith.constant 1.000000e+00 : f32
    %32 = vector.broadcast %cst_10 : f32 to vector<1x128xf32>
    %cst_11 = arith.constant dense<0.000000e+00> : vector<1x128xf32>
    %33 = tpu.matmul %32, %31, %cst_11 {dimension_numbers = #tpu.dot_dimension_numbers<[1], [0], [0], [1], [0, 0, 1, 1], [], []>} : vector<1x128xf32>, vector<128x128xf32>, vector<1x128xf32> -> vector<1x128xf32>
    %c0_12 = arith.constant 0 : index
    %c0_13 = arith.constant 0 : index
    %34 = vector.load %arg4[%c0_12, %c0_13] : memref<1x128xf32, #tpu.memory_space<vmem>>, vector<1x128xf32>
    %35 = arith.addf %34, %33 : vector<1x128xf32>
    %c0_14 = arith.constant 0 : index
    %c0_15 = arith.constant 0 : index
    %36 = vector.load %arg4[%c0_14, %c0_15] : memref<1x128xf32, #tpu.memory_space<vmem>>, vector<1x128xf32>
    tpu.vector_store %arg4[%c0_14, %c0_15], %35 {strides = array<i32>} : memref<1x128xf32, #tpu.memory_space<vmem>>, vector<1x128xf32>,
    %c4_i32 = arith.constant 4 : i32
    %37 = arith.cmpi eq, %arg1, %c4_i32 : i32
    %38 = arith.extui %37 : i1 to i32
    %c0_i32_16 = arith.constant 0 : i32
    %39 = arith.cmpi ne, %38, %c0_i32_16 : i32
    scf.if %39 {
      %c0_17 = arith.constant 0 : index
      %c0_18 = arith.constant 0 : index
      %40 = vector.load %arg4[%c0_17, %c0_18] : memref<1x128xf32, #tpu.memory_space<vmem>>, vector<1x128xf32>
      %cst_19 = arith.constant 0.000000e+00 : f32
      %41 = vector.broadcast %cst_19 : f32 to vector<1x128xf32>
      %42 = arith.cmpf ogt, %40, %41 : vector<1x128xf32>
      %43 = arith.extui %42 : vector<1x128xi1> to vector<1x128xi32>
      %44 = arith.sitofp %43 : vector<1x128xi32> to vector<1x128xf32>
      %c0_20 = arith.constant 0 : index
      %c0_21 = arith.constant 0 : index
      %45 = vector.load %arg4[%c0_20, %c0_21] : memref<1x128xf32, #tpu.memory_space<vmem>>, vector<1x128xf32>
      tpu.vector_store %arg4[%c0_20, %c0_21], %44 {strides = array<i32>} : memref<1x128xf32, #tpu.memory_space<vmem>>, vector<1x128xf32>,
    } else {
    }
    return
  }
  func.func @transform_0(%arg0: i32, %arg1: i32) -> (i32, i32) {
    %c0_i32 = arith.constant 0 : i32
    %c0_i32_0 = arith.constant 0 : i32
    %c0_i32_1 = arith.constant 0 : i32
    return %c0_i32, %c0_i32_0 : i32, i32
  }
  func.func @transform_1(%arg0: i32, %arg1: i32) -> (i32, i32) {
    %c0_i32 = arith.constant 0 : i32
    %c0_i32_0 = arith.constant 0 : i32
    return %arg1, %c0_i32 : i32, i32
  }
  func.func @transform_2(%arg0: i32, %arg1: i32) -> (i32, i32) {
    %c0_i32 = arith.constant 0 : i32
    %c0_i32_0 = arith.constant 0 : i32
    return %c0_i32, %arg0 : i32, i32
  }
}

</mosaic_0001>

<llo_original>
// kernel: _sat_cnf_forward.1
$region0: #{_sat_cnf_forward.1}
  #allocation0 [shape = 'u32[]', space=smem, size = 0x4, offset = 0x4, fixed_abs, tag = 'smem constant byte address 0x4 - core index']
  #allocation1 [shape = 'u32[72,128]{1,0:T(1,128)}', space=vmem, size = 0x9000, scoped, tag = 'internal scratch']
  %s0 = inlined_call_operand.vmem [shape: f32[128,2], index: 0, kind: input, shape index: {}]
  %s1 = inlined_call_operand.vmem [shape: s32[640,3], index: 1, kind: input, shape index: {}]
  %s2 = inlined_call_operand.vmem [shape: f32[1,256], index: 2, kind: output, shape index: {}]
  %s3 = sld [smem:[#allocation0]]
  $region49: #{_sat_cnf_forward.1} parent=0
    _
  %s5 = ssub.s32 1, %s3
  %s6 = scalar_select 0, %s5, %s3
  loop: start=0, step=1, limit=12
  $region2: #{_sat_cnf_forward.1} parent=0 // loop_pre_header
    _
  $region3: #{_sat_cnf_forward.1} parent=0 // loop_header
    %s8 = sphi 0, %s12
    %p9 = scmp.ge.s32.totalorder %s8, 12
    %s15 = sphi 0, %s27
    %s16 = sphi 0, %s23
    %s17 = sphi 0, %s15
    %s18 = sphi 0, %s16
    %s19 = sphi 0, %s17
    %s20 = sphi 0, %s18
    %s28 = sphi 0, %s28
    %s30 = sphi 0, %s28
    %s31 = sphi 0, %s30
    %s45 = sphi 0, %s31
    %s51 = sphi 0, %s53
    %s54 = sphi 0, %s51
    %s55 = sphi 0, %s54
    %s71 = sphi 0, %s55
    %s77 = sphi 0, %s79
    %s80 = sphi 0, %s77
    %s81 = sphi 0, %s80
    %s97 = sphi 0, %s81
  $region4: #{_sat_cnf_forward.1} parent=0 // loop_header_branch
    %11 = sbr.rel (%p9) target = $region8
  $region5: #{_sat_cnf_forward.1} parent=0 // loop_body
    %s13 = ssub.s32 %s8, 1
    %s14 = ssub.s32 %s8, 2
    %s21 = sadd.s32 1, %s16
    %p22 = scmp.ge.s32.totalorder %s21, 5
    %s23 = scalar_select %p22, 0, %s21
    %s24 = sadd.s32 1, %s15
    %s25 = scalar_select %p22, %s24, %s15
    %p26 = scmp.ge.s32.totalorder %s25, 2
    %s27 = scalar_select %p26, 0, %s25
    %s29 = sadd.s32 %s28, 1
    %p32 = scmp.eq.s32.totalorder %s8, 9
    %p33 = scmp.ne.s32.totalorder %s28, %s30
    %p34 = scmp.eq.s32.totalorder %s8, 0
    %p35 = por %p33, %p34
    %p36 = scmp.ne.s32.totalorder %s28, %s30
    %p37 = scmp.eq.s32.totalorder %s13, 9
    %p38 = por %p36, %p37
    %p39 = scmp.ne.s32.totalorder %s30, %s31
    %p40 = scmp.eq.s32.totalorder %s13, 0
    %p41 = por %p39, %p40
    %p42 = scmp.ne.s32.totalorder %s30, %s31
    %p43 = scmp.eq.s32.totalorder %s14, 9
    %p44 = por %p42, %p43
    %p46 = scmp.ne.s32.totalorder %s31, %s45
    %p47 = scmp.eq.s32.totalorder %s14, 0
    %p48 = por %p46, %p47
    %s49 = ssub.s32 %s16, %s23
    %p50 = scmp.eq.s32.totalorder %s49, 0
    %s52 = sadd.s32 %s51, 1
    %s53 = scalar_select %p50, %s51, %s52
    %p56 = pneg %p50
    %p57 = scmp.eq.s32.totalorder %s8, 9
    %p58 = por %p56, %p57
    %p59 = scmp.ne.s32.totalorder %s51, %s54
    %p60 = scmp.eq.s32.totalorder %s8, 0
    %p61 = por %p59, %p60
    %p62 = scmp.ne.s32.totalorder %s51, %s54
    %p63 = scmp.eq.s32.totalorder %s13, 9
    %p64 = por %p62, %p63
    %p65 = scmp.ne.s32.totalorder %s54, %s55
    %p66 = scmp.eq.s32.totalorder %s13, 0
    %p67 = por %p65, %p66
    %p68 = scmp.ne.s32.totalorder %s54, %s55
    %p69 = scmp.eq.s32.totalorder %s14, 9
    %p70 = por %p68, %p69
    %p72 = scmp.ne.s32.totalorder %s55, %s71
    %p73 = scmp.eq.s32.totalorder %s14, 0
    %p74 = por %p72, %p73
    %s75 = ssub.s32 %s15, %s27
    %p76 = scmp.eq.s32.totalorder %s75, 0
    %s78 = sadd.s32 %s77, 1
    %s79 = scalar_select %p76, %s77, %s78
    %p82 = pneg %p76
    %p83 = scmp.eq.s32.totalorder %s8, 9
    %p84 = por %p82, %p83
    %p85 = scmp.ne.s32.totalorder %s77, %s80
    %p86 = scmp.eq.s32.totalorder %s8, 0
    %p87 = por %p85, %p86
    %p88 = scmp.ne.s32.totalorder %s77, %s80
    %p89 = scmp.eq.s32.totalorder %s13, 9
    %p90 = por %p88, %p89
    %p91 = scmp.ne.s32.totalorder %s80, %s81
    %p92 = scmp.eq.s32.totalorder %s13, 0
    %p93 = por %p91, %p92
    %p94 = scmp.ne.s32.totalorder %s80, %s81
    %p95 = scmp.eq.s32.totalorder %s14, 9
    %p96 = por %p94, %p95
    %p98 = scmp.ne.s32.totalorder %s81, %s97
    %p99 = scmp.eq.s32.totalorder %s14, 0
    %p100 = por %p98, %p99
    %p101 = scmp.le.s32.totalorder 1, %s8
    %p102 = scmp.lt.s32.totalorder %s8, 11
    %p103 = pnand %p101, %p102
    %p104 = pneg %p103
    // Predicated region
    $region9: #{_sat_cnf_forward.1} parent=5 // pred_check
      _
    $region10: #{_sat_cnf_forward.1} parent=5 // pred_check_branch
      %106 = sbr.rel (%p103) target = $region12
    $region11: #{_sat_cnf_forward.1} parent=5 // pred_region
      %s107 = ssub.s32 %s8, 1
      // Predicated region
      $region13: #{_sat_cnf_forward.1} parent=11 // pred_check
        %p108 = pneg %p41
      $region14: #{_sat_cnf_forward.1} parent=11 // pred_check_branch
        %110 = sbr.rel (%p108) target = $region16
      $region15: #{_sat_cnf_forward.1} parent=11 // pred_region
        _
      $region16: #{_sat_cnf_forward.1} parent=11 // pred_fallthru
        _
    $region12: #{_sat_cnf_forward.1} parent=5 // pred_fallthru
      _
    %p111 = scmp.lt.s32.totalorder %s8, 10
    // Predicated region
    $region17: #{_sat_cnf_forward.1} parent=5 // pred_check
      %p112 = pneg %p111
    $region18: #{_sat_cnf_forward.1} parent=5 // pred_check_branch
      %114 = sbr.rel (%p112) target = $region20
    $region19: #{_sat_cnf_forward.1} parent=5 // pred_region
      // Predicated region
      $region21: #{_sat_cnf_forward.1} parent=19 // pred_check
        %p115 = pneg %p61
      $region22: #{_sat_cnf_forward.1} parent=19 // pred_check_branch
        %117 = sbr.rel (%p115) target = $region24
      $region23: #{_sat_cnf_forward.1} parent=19 // pred_region
        %s118 = smul.u32 16, %s16
        %p119 = scmp.lt.s32.totalorder %s118, 79
        %s120 = scalar_select %p119, %s118, 79
        %s121 = smul.addr %s120, 8
        %s122 = scalar_lea.vmem %s1, %s121
        %s123 = smul.u32 16, %s16
      $region24: #{_sat_cnf_forward.1} parent=19 // pred_fallthru
        _
    $region20: #{_sat_cnf_forward.1} parent=5 // pred_fallthru
      _
    %p124 = scmp.le.s32.totalorder 1, %s8
    %p125 = scmp.lt.s32.totalorder %s8, 11
    %p126 = pnand %p124, %p125
    %p127 = pneg %p126
    // Predicated region
    $region25: #{_sat_cnf_forward.1} parent=5 // pred_check
      _
    $region26: #{_sat_cnf_forward.1} parent=5 // pred_check_branch
      %129 = sbr.rel (%p126) target = $region28
    $region27: #{_sat_cnf_forward.1} parent=5 // pred_region
      %s130 = ssub.s32 %s8, 1
      %p131 = pneg %p41
      %p132 = pneg %p38
      %s133 = smul.u32 16, %s18
      %p134 = scmp.lt.s32.totalorder %s133, 79
      %s135 = scalar_select %p134, %s133, 79
      %s136 = smul.addr %s135, 8
      %s137 = scalar_lea.vmem %s1, %s136
      %p138 = pneg %p67
      %p139 = pneg %p64
      %p140 = pneg %p93
      %p141 = pneg %p90
      %p142 = scmp.lt.s32.totalorder %s17, 1
      %s143 = scalar_select %p142, %s17, 1
      %s144 = scalar_lea.vmem %s2, %s143
      %s145 = smul.u32 16, %s18
      %p146 = scmp.lt.s32.totalorder %s145, 79
      %s147 = scalar_select %p146, %s145, 79
      %s148 = smul.addr %s147, 8
      %s149 = scalar_lea.vmem %s1, %s148
      %s150 = smul.u32 16, %s18
      %p151 = scmp.lt.s32.totalorder %s17, 1
      %s152 = scalar_select %p151, %s17, 1
      %s153 = scalar_lea.vmem %s2, %s152
      %p154 = scmp.eq.s32.totalorder %s18, 0
      // Predicated region
      $region29: #{_sat_cnf_forward.1} parent=27 // pred_check
        %p155 = pneg %p154
      $region30: #{_sat_cnf_forward.1} parent=27 // pred_check_branch
        %157 = sbr.rel (%p155) target = $region32
      $region31: #{_sat_cnf_forward.1} parent=27 // pred_region
        %158 = vst [vmem:[%s153] sm:$0x1] 0.0
      $region32: #{_sat_cnf_forward.1} parent=27 // pred_fallthru
        _
      %v159 = vld [vmem:[%s149] sm:$0xff]
      %v160 = vld [vmem:[%s149 + $0x8] sm:$0xff]
      %v161 = vld [vmem:[%s149 + $0x10] sm:$0xff]
      %v162 = vld [vmem:[%s149 + $0x18] sm:$0xff]
      %v163 = vld [vmem:[%s149 + $0x20] sm:$0xff]
      %v164 = vld [vmem:[%s149 + $0x28] sm:$0xff]
      %v165 = vld [vmem:[%s149 + $0x30] sm:$0xff]
      %v166 = vld [vmem:[%s149 + $0x38] sm:$0xff]
      %v167 = vld [vmem:[%s149 + $0x40] sm:$0xff]
      %v168 = vld [vmem:[%s149 + $0x48] sm:$0xff]
      %v169 = vld [vmem:[%s149 + $0x50] sm:$0xff]
      %v170 = vld [vmem:[%s149 + $0x58] sm:$0xff]
      %v171 = vld [vmem:[%s149 + $0x60] sm:$0xff]
      %v172 = vld [vmem:[%s149 + $0x68] sm:$0xff]
      %v173 = vld [vmem:[%s149 + $0x70] sm:$0xff]
      %v174 = vld [vmem:[%s149 + $0x78] sm:$0xff]
      %v175 = vlaneseq
      %v176 = vand.u32 %v175, 127
      %177 = vset.pattern.permute.xlu0 0
      %178 = vperm.xlu0 %177, %v159
      %v179 = vpop.permute.xlu0 %178
      %180 = vset.pattern.permute.xlu0 0
      %181 = vperm.xlu0 %180, %v160
      %v182 = vpop.permute.xlu0 %181
      %183 = vset.pattern.permute.xlu0 0
      %184 = vperm.xlu0 %183, %v161
      %v185 = vpop.permute.xlu0 %184
      %186 = vset.pattern.permute.xlu0 0
      %187 = vperm.xlu0 %186, %v162
      %v188 = vpop.permute.xlu0 %187
      %189 = vset.pattern.permute.xlu0 0
      %190 = vperm.xlu0 %189, %v163
      %v191 = vpop.permute.xlu0 %190
      %192 = vset.pattern.permute.xlu0 0
      %193 = vperm.xlu0 %192, %v164
      %v194 = vpop.permute.xlu0 %193
      %195 = vset.pattern.permute.xlu0 0
      %196 = vperm.xlu0 %195, %v165
      %v197 = vpop.permute.xlu0 %196
      %198 = vset.pattern.permute.xlu0 0
      %199 = vperm.xlu0 %198, %v166
      %v200 = vpop.permute.xlu0 %199
      %201 = vset.pattern.permute.xlu0 0
      %202 = vperm.xlu0 %201, %v167
      %v203 = vpop.permute.xlu0 %202
      %204 = vset.pattern.permute.xlu0 0
      %205 = vperm.xlu0 %204, %v168
      %v206 = vpop.permute.xlu0 %205
      %207 = vset.pattern.permute.xlu0 0
      %208 = vperm.xlu0 %207, %v169
      %v209 = vpop.permute.xlu0 %208
      %210 = vset.pattern.permute.xlu0 0
      %211 = vperm.xlu0 %210, %v170
      %v212 = vpop.permute.xlu0 %211
      %213 = vset.pattern.permute.xlu0 0
      %214 = vperm.xlu0 %213, %v171
      %v215 = vpop.permute.xlu0 %214
      %216 = vset.pattern.permute.xlu0 0
      %217 = vperm.xlu0 %216, %v172
      %v218 = vpop.permute.xlu0 %217
      %219 = vset.pattern.permute.xlu0 0
      %220 = vperm.xlu0 %219, %v173
      %v221 = vpop.permute.xlu0 %220
      %222 = vset.pattern.permute.xlu0 0
      %223 = vperm.xlu0 %222, %v174
      %v224 = vpop.permute.xlu0 %223
      %vm225 = vcmp.eq.s32.totalorder %v176, %v179
      %vm226 = vcmp.eq.s32.totalorder %v176, %v182
      %vm227 = vcmp.eq.s32.totalorder %v176, %v185
      %vm228 = vcmp.eq.s32.totalorder %v176, %v188
      %vm229 = vcmp.eq.s32.totalorder %v176, %v191
      %vm230 = vcmp.eq.s32.totalorder %v176, %v194
      %vm231 = vcmp.eq.s32.totalorder %v176, %v197
      %vm232 = vcmp.eq.s32.totalorder %v176, %v200
      %vm233 = vcmp.eq.s32.totalorder %v176, %v203
      %vm234 = vcmp.eq.s32.totalorder %v176, %v206
      %vm235 = vcmp.eq.s32.totalorder %v176, %v209
      %vm236 = vcmp.eq.s32.totalorder %v176, %v212
      %vm237 = vcmp.eq.s32.totalorder %v176, %v215
      %vm238 = vcmp.eq.s32.totalorder %v176, %v218
      %vm239 = vcmp.eq.s32.totalorder %v176, %v221
      %vm240 = vcmp.eq.s32.totalorder %v176, %v224
      %v241 = vsel %vm225, 1, 0
      %v242 = vsel %vm226, 1, 0
      %v243 = vsel %vm227, 1, 0
      %v244 = vsel %vm228, 1, 0
      %v245 = vsel %vm229, 1, 0
      %v246 = vsel %vm230, 1, 0
      %v247 = vsel %vm231, 1, 0
      %v248 = vsel %vm232, 1, 0
      %v249 = vsel %vm233, 1, 0
      %v250 = vsel %vm234, 1, 0
      %v251 = vsel %vm235, 1, 0
      %v252 = vsel %vm236, 1, 0
      %v253 = vsel %vm237, 1, 0
      %v254 = vsel %vm238, 1, 0
      %v255 = vsel %vm239, 1, 0
      %v256 = vsel %vm240, 1, 0
      %v257 = vcvt.s32.f32 %v241
      %v258 = vcvt.s32.f32 %v242
      %v259 = vcvt.s32.f32 %v243
      %v260 = vcvt.s32.f32 %v244
      %v261 = vcvt.s32.f32 %v245
      %v262 = vcvt.s32.f32 %v246
      %v263 = vcvt.s32.f32 %v247
      %v264 = vcvt.s32.f32 %v248
      %v265 = vcvt.s32.f32 %v249
      %v266 = vcvt.s32.f32 %v250
      %v267 = vcvt.s32.f32 %v251
      %v268 = vcvt.s32.f32 %v252
      %v269 = vcvt.s32.f32 %v253
      %v270 = vcvt.s32.f32 %v254
      %v271 = vcvt.s32.f32 %v255
      %v272 = vcvt.s32.f32 %v256
      %v273 = vld [vmem:[%s0] sm:$0xff]
      %v274 = vld [vmem:[%s0 + $0x8] sm:$0xff]
      %v275 = vld [vmem:[%s0 + $0x10] sm:$0xff]
      %v276 = vld [vmem:[%s0 + $0x18] sm:$0xff]
      %v277 = vld [vmem:[%s0 + $0x20] sm:$0xff]
      %v278 = vld [vmem:[%s0 + $0x28] sm:$0xff]
      %v279 = vld [vmem:[%s0 + $0x30] sm:$0xff]
      %v280 = vld [vmem:[%s0 + $0x38] sm:$0xff]
      %v281 = vld [vmem:[%s0 + $0x40] sm:$0xff]
      %v282 = vld [vmem:[%s0 + $0x48] sm:$0xff]
      %v283 = vld [vmem:[%s0 + $0x50] sm:$0xff]
      %v284 = vld [vmem:[%s0 + $0x58] sm:$0xff]
      %v285 = vld [vmem:[%s0 + $0x60] sm:$0xff]
      %v286 = vld [vmem:[%s0 + $0x68] sm:$0xff]
      %v287 = vld [vmem:[%s0 + $0x70] sm:$0xff]
      %v288 = vld [vmem:[%s0 + $0x78] sm:$0xff]
      %289 = vmatpush.msra.mxu0 %v288
      %290 = vmatpush.msra.mxu0 %v287
      %291 = vmatpush.msra.mxu0 %v286
      %292 = vmatpush.msra.mxu0 %v285
      %293 = vmatpush.msra.mxu0 %v284
      %294 = vmatpush.msra.mxu0 %v283
      %295 = vmatpush.msra.mxu0 %v282
      %296 = vmatpush.msra.mxu0 %v281
      %297 = vmatpush.msra.mxu0 %v280
      %298 = vmatpush.msra.mxu0 %v279
      %299 = vmatpush.msra.mxu0 %v278
      %300 = vmatpush.msra.mxu0 %v277
      %301 = vmatpush.msra.mxu0 %v276
      %302 = vmatpush.msra.mxu0 %v275
      %303 = vmatpush.msra.mxu0 %v274
      %304 = vmatpush.msra.mxu0 %v273
      %305 = vmatmul.f32.gmra.mxu0 %v257
      %v306 = vpop.f32.mrf.mxu0
      %v307 = vadd.f32 0.0, %v306
      %308 = vmatmul.f32.gmra.mxu0 %v258
      %v309 = vpop.f32.mrf.mxu0
      %v310 = vadd.f32 0.0, %v309
      %311 = vmatmul.f32.gmra.mxu0 %v259
      %v312 = vpop.f32.mrf.mxu0
      %v313 = vadd.f32 0.0, %v312
      %314 = vmatmul.f32.gmra.mxu0 %v260
      %v315 = vpop.f32.mrf.mxu0
      %v316 = vadd.f32 0.0, %v315
      %317 = vmatmul.f32.gmra.mxu0 %v261
      %v318 = vpop.f32.mrf.mxu0
      %v319 = vadd.f32 0.0, %v318
      %320 = vmatmul.f32.gmra.mxu0 %v262
      %v321 = vpop.f32.mrf.mxu0
      %v322 = vadd.f32 0.0, %v321
      %323 = vmatmul.f32.gmra.mxu0 %v263
      %v324 = vpop.f32.mrf.mxu0
      %v325 = vadd.f32 0.0, %v324
      %326 = vmatmul.f32.gmra.mxu0 %v264
      %v327 = vpop.f32.mrf.mxu0
      %v328 = vadd.f32 0.0, %v327
      %329 = vmatmul.f32.gmra.mxu0 %v265
      %v330 = vpop.f32.mrf.mxu0
      %v331 = vadd.f32 0.0, %v330
      %332 = vmatmul.f32.gmra.mxu0 %v266
      %v333 = vpop.f32.mrf.mxu0
      %v334 = vadd.f32 0.0, %v333
      %335 = vmatmul.f32.gmra.mxu0 %v267
      %v336 = vpop.f32.mrf.mxu0
      %v337 = vadd.f32 0.0, %v336
      %338 = vmatmul.f32.gmra.mxu0 %v268
      %v339 = vpop.f32.mrf.mxu0
      %v340 = vadd.f32 0.0, %v339
      %341 = vmatmul.f32.gmra.mxu0 %v269
      %v342 = vpop.f32.mrf.mxu0
      %v343 = vadd.f32 0.0, %v342
      %344 = vmatmul.f32.gmra.mxu0 %v270
      %v345 = vpop.f32.mrf.mxu0
      %v346 = vadd.f32 0.0, %v345
      %347 = vmatmul.f32.gmra.mxu0 %v271
      %v348 = vpop.f32.mrf.mxu0
      %v349 = vadd.f32 0.0, %v348
      %350 = vmatmul.f32.gmra.mxu0 %v272
      %v351 = vpop.f32.mrf.mxu0
      %v352 = vadd.f32 0.0, %v351
      %353 = vdwg.mxu0
      %vm354 = vcmp.gt.s32.totalorder %v159, 0
      %vm355 = vcmp.gt.s32.totalorder %v160, 0
      %vm356 = vcmp.gt.s32.totalorder %v161, 0
      %vm357 = vcmp.gt.s32.totalorder %v162, 0
      %vm358 = vcmp.gt.s32.totalorder %v163, 0
      %vm359 = vcmp.gt.s32.totalorder %v164, 0
      %vm360 = vcmp.gt.s32.totalorder %v165, 0
      %vm361 = vcmp.gt.s32.totalorder %v166, 0
      %vm362 = vcmp.gt.s32.totalorder %v167, 0
      %vm363 = vcmp.gt.s32.totalorder %v168, 0
      %vm364 = vcmp.gt.s32.totalorder %v169, 0
      %vm365 = vcmp.gt.s32.totalorder %v170, 0
      %vm366 = vcmp.gt.s32.totalorder %v171, 0
      %vm367 = vcmp.gt.s32.totalorder %v172, 0
      %vm368 = vcmp.gt.s32.totalorder %v173, 0
      %vm369 = vcmp.gt.s32.totalorder %v174, 0
      %vm370 = vcmp.lt.s32.totalorder %v159, 0
      %vm371 = vcmp.lt.s32.totalorder %v160, 0
      %vm372 = vcmp.lt.s32.totalorder %v161, 0
      %vm373 = vcmp.lt.s32.totalorder %v162, 0
      %vm374 = vcmp.lt.s32.totalorder %v163, 0
      %vm375 = vcmp.lt.s32.totalorder %v164, 0
      %vm376 = vcmp.lt.s32.totalorder %v165, 0
      %vm377 = vcmp.lt.s32.totalorder %v166, 0
      %vm378 = vcmp.lt.s32.totalorder %v167, 0
      %vm379 = vcmp.lt.s32.totalorder %v168, 0
      %vm380 = vcmp.lt.s32.totalorder %v169, 0
      %vm381 = vcmp.lt.s32.totalorder %v170, 0
      %vm382 = vcmp.lt.s32.totalorder %v171, 0
      %vm383 = vcmp.lt.s32.totalorder %v172, 0
      %vm384 = vcmp.lt.s32.totalorder %v173, 0
      %vm385 = vcmp.lt.s32.totalorder %v174, 0
      %402 = vrot.lane.b32.xlu0 %v307, 1
      %v403 = vpop.permute.xlu0 %402
      %404 = vrot.lane.b32.xlu0 %v310, 1
      %v405 = vpop.permute.xlu0 %404
      %406 = vrot.lane.b32.xlu0 %v313, 1
      %v407 = vpop.permute.xlu0 %406
      %408 = vrot.lane.b32.xlu0 %v316, 1
      %v409 = vpop.permute.xlu0 %408
      %410 = vrot.lane.b32.xlu0 %v319, 1
      %v411 = vpop.permute.xlu0 %410
      %412 = vrot.lane.b32.xlu0 %v322, 1
      %v413 = vpop.permute.xlu0 %412
      %414 = vrot.lane.b32.xlu0 %v325, 1
      %v415 = vpop.permute.xlu0 %414
      %416 = vrot.lane.b32.xlu0 %v328, 1
      %v417 = vpop.permute.xlu0 %416
      %418 = vrot.lane.b32.xlu0 %v331, 1
      %v419 = vpop.permute.xlu0 %418
      %420 = vrot.lane.b32.xlu0 %v334, 1
      %v421 = vpop.permute.xlu0 %420
      %422 = vrot.lane.b32.xlu0 %v337, 1
      %v423 = vpop.permute.xlu0 %422
      %424 = vrot.lane.b32.xlu0 %v340, 1
      %v425 = vpop.permute.xlu0 %424
      %426 = vrot.lane.b32.xlu0 %v343, 1
      %v427 = vpop.permute.xlu0 %426
      %428 = vrot.lane.b32.xlu0 %v346, 1
      %v429 = vpop.permute.xlu0 %428
      %430 = vrot.lane.b32.xlu0 %v349, 1
      %v431 = vpop.permute.xlu0 %430
      %432 = vrot.lane.b32.xlu0 %v352, 1
      %v433 = vpop.permute.xlu0 %432
      %v450 = vsel %vm370, %v403, 0.0
      %v451 = vsel %vm371, %v405, 0.0
      %v452 = vsel %vm372, %v407, 0.0
      %v453 = vsel %vm373, %v409, 0.0
      %v454 = vsel %vm374, %v411, 0.0
      %v455 = vsel %vm375, %v413, 0.0
      %v456 = vsel %vm376, %v415, 0.0
      %v457 = vsel %vm377, %v417, 0.0
      %v458 = vsel %vm378, %v419, 0.0
      %v459 = vsel %vm379, %v421, 0.0
      %v460 = vsel %vm380, %v423, 0.0
      %v461 = vsel %vm381, %v425, 0.0
      %v462 = vsel %vm382, %v427, 0.0
      %v463 = vsel %vm383, %v429, 0.0
      %v464 = vsel %vm384, %v431, 0.0
      %v465 = vsel %vm385, %v433, 0.0
      %466 = vrot.lane.b32.xlu0 %v307, 2
      %v467 = vpop.permute.xlu0 %466
      %468 = vrot.lane.b32.xlu0 %v310, 2
      %v469 = vpop.permute.xlu0 %468
      %470 = vrot.lane.b32.xlu0 %v313, 2
      %v471 = vpop.permute.xlu0 %470
      %472 = vrot.lane.b32.xlu0 %v316, 2
      %v473 = vpop.permute.xlu0 %472
      %474 = vrot.lane.b32.xlu0 %v319, 2
      %v475 = vpop.permute.xlu0 %474
      %476 = vrot.lane.b32.xlu0 %v322, 2
      %v477 = vpop.permute.xlu0 %476
      %478 = vrot.lane.b32.xlu0 %v325, 2
      %v479 = vpop.permute.xlu0 %478
      %480 = vrot.lane.b32.xlu0 %v328, 2
      %v481 = vpop.permute.xlu0 %480
      %482 = vrot.lane.b32.xlu0 %v331, 2
      %v483 = vpop.permute.xlu0 %482
      %484 = vrot.lane.b32.xlu0 %v334, 2
      %v485 = vpop.permute.xlu0 %484
      %486 = vrot.lane.b32.xlu0 %v337, 2
      %v487 = vpop.permute.xlu0 %486
      %488 = vrot.lane.b32.xlu0 %v340, 2
      %v489 = vpop.permute.xlu0 %488
      %490 = vrot.lane.b32.xlu0 %v343, 2
      %v491 = vpop.permute.xlu0 %490
      %492 = vrot.lane.b32.xlu0 %v346, 2
      %v493 = vpop.permute.xlu0 %492
      %494 = vrot.lane.b32.xlu0 %v349, 2
      %v495 = vpop.permute.xlu0 %494
      %496 = vrot.lane.b32.xlu0 %v352, 2
      %v497 = vpop.permute.xlu0 %496
      %v514 = vsel %vm354, %v467, %v450
      %v515 = vsel %vm355, %v469, %v451
      %v516 = vsel %vm356, %v471, %v452
      %v517 = vsel %vm357, %v473, %v453
      %v518 = vsel %vm358, %v475, %v454
      %v519 = vsel %vm359, %v477, %v455
      %v520 = vsel %vm360, %v479, %v456
      %v521 = vsel %vm361, %v481, %v457
      %v522 = vsel %vm362, %v483, %v458
      %v523 = vsel %vm363, %v485, %v459
      %v524 = vsel %vm364, %v487, %v460
      %v525 = vsel %vm365, %v489, %v461
      %v526 = vsel %vm366, %v491, %v462
      %v527 = vsel %vm367, %v493, %v463
      %v528 = vsel %vm368, %v495, %v464
      %v529 = vsel %vm369, %v497, %v465
      %s530 = smul.u32 %s17, 128
      %v531 = vstv %s530
      %v532 = vsub.s32 %v159, %v531
      %v533 = vsub.s32 %v160, %v531
      %v534 = vsub.s32 %v161, %v531
      %v535 = vsub.s32 %v162, %v531
      %v536 = vsub.s32 %v163, %v531
      %v537 = vsub.s32 %v164, %v531
      %v538 = vsub.s32 %v165, %v531
      %v539 = vsub.s32 %v166, %v531
      %v540 = vsub.s32 %v167, %v531
      %v541 = vsub.s32 %v168, %v531
      %v542 = vsub.s32 %v169, %v531
      %v543 = vsub.s32 %v170, %v531
      %v544 = vsub.s32 %v171, %v531
      %v545 = vsub.s32 %v172, %v531
      %v546 = vsub.s32 %v173, %v531
      %v547 = vsub.s32 %v174, %v531
      %548 = vset.pattern.permute.xlu0 1
      %549 = vperm.xlu0 %548, %v532
      %v550 = vpop.permute.xlu0 %549
      %551 = vset.pattern.permute.xlu0 1
      %552 = vperm.xlu0 %551, %v533
      %v553 = vpop.permute.xlu0 %552
      %554 = vset.pattern.permute.xlu0 1
      %555 = vperm.xlu0 %554, %v534
      %v556 = vpop.permute.xlu0 %555
      %557 = vset.pattern.permute.xlu0 1
      %558 = vperm.xlu0 %557, %v535
      %v559 = vpop.permute.xlu0 %558
      %560 = vset.pattern.permute.xlu0 1
      %561 = vperm.xlu0 %560, %v536
      %v562 = vpop.permute.xlu0 %561
      %563 = vset.pattern.permute.xlu0 1
      %564 = vperm.xlu0 %563, %v537
      %v565 = vpop.permute.xlu0 %564
      %566 = vset.pattern.permute.xlu0 1
      %567 = vperm.xlu0 %566, %v538
      %v568 = vpop.permute.xlu0 %567
      %569 = vset.pattern.permute.xlu0 1
      %570 = vperm.xlu0 %569, %v539
      %v571 = vpop.permute.xlu0 %570
      %572 = vset.pattern.permute.xlu0 1
      %573 = vperm.xlu0 %572, %v540
      %v574 = vpop.permute.xlu0 %573
      %575 = vset.pattern.permute.xlu0 1
      %576 = vperm.xlu0 %575, %v541
      %v577 = vpop.permute.xlu0 %576
      %578 = vset.pattern.permute.xlu0 1
      %579 = vperm.xlu0 %578, %v542
      %v580 = vpop.permute.xlu0 %579
      %581 = vset.pattern.permute.xlu0 1
      %582 = vperm.xlu0 %581, %v543
      %v583 = vpop.permute.xlu0 %582
      %584 = vset.pattern.permute.xlu0 1
      %585 = vperm.xlu0 %584, %v544
      %v586 = vpop.permute.xlu0 %585
      %587 = vset.pattern.permute.xlu0 1
      %588 = vperm.xlu0 %587, %v545
      %v589 = vpop.permute.xlu0 %588
      %590 = vset.pattern.permute.xlu0 1
      %591 = vperm.xlu0 %590, %v546
      %v592 = vpop.permute.xlu0 %591
      %593 = vset.pattern.permute.xlu0 1
      %594 = vperm.xlu0 %593, %v547
      %v595 = vpop.permute.xlu0 %594
      %vm596 = vcmp.eq.s32.totalorder %v176, %v550
      %vm597 = vcmp.eq.s32.totalorder %v176, %v553
      %vm598 = vcmp.eq.s32.totalorder %v176, %v556
      %vm599 = vcmp.eq.s32.totalorder %v176, %v559
      %vm600 = vcmp.eq.s32.totalorder %v176, %v562
      %vm601 = vcmp.eq.s32.totalorder %v176, %v565
      %vm602 = vcmp.eq.s32.totalorder %v176, %v568
      %vm603 = vcmp.eq.s32.totalorder %v176, %v571
      %vm604 = vcmp.eq.s32.totalorder %v176, %v574
      %vm605 = vcmp.eq.s32.totalorder %v176, %v577
      %vm606 = vcmp.eq.s32.totalorder %v176, %v580
      %vm607 = vcmp.eq.s32.totalorder %v176, %v583
      %vm608 = vcmp.eq.s32.totalorder %v176, %v586
      %vm609 = vcmp.eq.s32.totalorder %v176, %v589
      %vm610 = vcmp.eq.s32.totalorder %v176, %v592
      %vm611 = vcmp.eq.s32.totalorder %v176, %v595
      %613 = vset.pattern.permute.xlu0 2
      %614 = vperm.xlu0 %613, %v514
      %v615 = vpop.permute.xlu0 %614
      %618 = vset.pattern.permute.xlu0 2
      %619 = vperm.xlu0 %618, %v515
      %v620 = vpop.permute.xlu0 %619
      %623 = vset.pattern.permute.xlu0 2
      %624 = vperm.xlu0 %623, %v516
      %v625 = vpop.permute.xlu0 %624
      %628 = vset.pattern.permute.xlu0 2
      %629 = vperm.xlu0 %628, %v517
      %v630 = vpop.permute.xlu0 %629
      %633 = vset.pattern.permute.xlu0 2
      %634 = vperm.xlu0 %633, %v518
      %v635 = vpop.permute.xlu0 %634
      %638 = vset.pattern.permute.xlu0 2
      %639 = vperm.xlu0 %638, %v519
      %v640 = vpop.permute.xlu0 %639
      %643 = vset.pattern.permute.xlu0 2
      %644 = vperm.xlu0 %643, %v520
      %v645 = vpop.permute.xlu0 %644
      %648 = vset.pattern.permute.xlu0 2
      %649 = vperm.xlu0 %648, %v521
      %v650 = vpop.permute.xlu0 %649
      %653 = vset.pattern.permute.xlu0 2
      %654 = vperm.xlu0 %653, %v522
      %v655 = vpop.permute.xlu0 %654
      %658 = vset.pattern.permute.xlu0 2
      %659 = vperm.xlu0 %658, %v523
      %v660 = vpop.permute.xlu0 %659
      %663 = vset.pattern.permute.xlu0 2
      %664 = vperm.xlu0 %663, %v524
      %v665 = vpop.permute.xlu0 %664
      %668 = vset.pattern.permute.xlu0 2
      %669 = vperm.xlu0 %668, %v525
      %v670 = vpop.permute.xlu0 %669
      %673 = vset.pattern.permute.xlu0 2
      %674 = vperm.xlu0 %673, %v526
      %v675 = vpop.permute.xlu0 %674
      %678 = vset.pattern.permute.xlu0 2
      %679 = vperm.xlu0 %678, %v527
      %v680 = vpop.permute.xlu0 %679
      %683 = vset.pattern.permute.xlu0 2
      %684 = vperm.xlu0 %683, %v528
      %v685 = vpop.permute.xlu0 %684
      %688 = vset.pattern.permute.xlu0 2
      %689 = vperm.xlu0 %688, %v529
      %v690 = vpop.permute.xlu0 %689
      %v692 = vsel %vm596, %v615, 0.0
      %v693 = vsel %vm597, %v620, 0.0
      %v694 = vsel %vm598, %v625, 0.0
      %v695 = vsel %vm599, %v630, 0.0
      %v696 = vsel %vm600, %v635, 0.0
      %v697 = vsel %vm601, %v640, 0.0
      %v698 = vsel %vm602, %v645, 0.0
      %v699 = vsel %vm603, %v650, 0.0
      %v700 = vsel %vm604, %v655, 0.0
      %v701 = vsel %vm605, %v660, 0.0
      %v702 = vsel %vm606, %v665, 0.0
      %v703 = vsel %vm607, %v670, 0.0
      %v704 = vsel %vm608, %v675, 0.0
      %v705 = vsel %vm609, %v680, 0.0
      %v706 = vsel %vm610, %v685, 0.0
      %v707 = vsel %vm611, %v690, 0.0
      %708 = vmatpush.msra.mxu0 %v707
      %709 = vmatpush.msra.mxu0 %v706
      %710 = vmatpush.msra.mxu0 %v705
      %711 = vmatpush.msra.mxu0 %v704
      %712 = vmatpush.msra.mxu0 %v703
      %713 = vmatpush.msra.mxu0 %v702
      %714 = vmatpush.msra.mxu0 %v701
      %715 = vmatpush.msra.mxu0 %v700
      %716 = vmatpush.msra.mxu0 %v699
      %717 = vmatpush.msra.mxu0 %v698
      %718 = vmatpush.msra.mxu0 %v697
      %719 = vmatpush.msra.mxu0 %v696
      %720 = vmatpush.msra.mxu0 %v695
      %721 = vmatpush.msra.mxu0 %v694
      %722 = vmatpush.msra.mxu0 %v693
      %723 = vmatpush.msra.mxu0 %v692
      %724 = vmatmul.f32.gmra.mxu0 1.0
      %v725 = vpop.f32.mrf.mxu0
      %v726 = vadd.f32 0.0, %v725
      %727 = vdwg.mxu0
      %v728 = vld [vmem:[%s153] sm:$0x1]
      %v729 = vadd.f32 %v728, %v726
      %730 = vst [vmem:[%s153] sm:$0x1] %v729
      %p731 = scmp.eq.s32.totalorder %s18, 4
      // Predicated region
      $region33: #{_sat_cnf_forward.1} parent=27 // pred_check
        %p732 = pneg %p731
      $region34: #{_sat_cnf_forward.1} parent=27 // pred_check_branch
        %734 = sbr.rel (%p732) target = $region36
      $region35: #{_sat_cnf_forward.1} parent=27 // pred_region
        %v735 = vld [vmem:[%s153] sm:$0x1]
        %vm736 = vcmp.gt.f32.partialorder %v735, 0.0
        %v737 = vsel %vm736, 1, 0
        %v738 = vcvt.s32.f32 %v737
        %739 = vst [vmem:[%s153] sm:$0x1] %v738
      $region36: #{_sat_cnf_forward.1} parent=27 // pred_fallthru
        _
      %p740 = scmp.lt.s32.totalorder %s17, 1
      %s741 = scalar_select %p740, %s17, 1
      %s742 = scalar_lea.vmem %s2, %s741
      // Predicated region
      $region37: #{_sat_cnf_forward.1} parent=27 // pred_check
        %p743 = pneg %p90
      $region38: #{_sat_cnf_forward.1} parent=27 // pred_check_branch
        %745 = sbr.rel (%p743) target = $region40
      $region39: #{_sat_cnf_forward.1} parent=27 // pred_region
        _
      $region40: #{_sat_cnf_forward.1} parent=27 // pred_fallthru
        _
    $region28: #{_sat_cnf_forward.1} parent=5 // pred_fallthru
      _
    %p746 = scmp.le.s32.totalorder 2, %s8
    // Predicated region
    $region41: #{_sat_cnf_forward.1} parent=5 // pred_check
      %p747 = pneg %p746
    $region42: #{_sat_cnf_forward.1} parent=5 // pred_check_branch
      %749 = sbr.rel (%p747) target = $region44
    $region43: #{_sat_cnf_forward.1} parent=5 // pred_region
      %s750 = ssub.s32 %s8, 2
      // Predicated region
      $region45: #{_sat_cnf_forward.1} parent=43 // pred_check
        %p751 = pneg %p96
      $region46: #{_sat_cnf_forward.1} parent=43 // pred_check_branch
        %753 = sbr.rel (%p751) target = $region48
      $region47: #{_sat_cnf_forward.1} parent=43 // pred_region
        %p754 = scmp.lt.s32.totalorder %s19, 1
        %s755 = scalar_select %p754, %s19, 1
        %s756 = scalar_lea.vmem %s2, %s755
      $region48: #{_sat_cnf_forward.1} parent=43 // pred_fallthru
        _
    $region44: #{_sat_cnf_forward.1} parent=5 // pred_fallthru
      _
  $region6: #{_sat_cnf_forward.1} parent=0 // loop_footer
    %s12 = sadd.s32 1, %s8
  $region7: #{_sat_cnf_forward.1} parent=0 // loop_footer_branch
    %7 = sbr.rel target = $region3
  $region8: #{_sat_cnf_forward.1} parent=0 // loop_exit
    _

</llo_original>
